<compile_context>
chip_gen: v5e
topology: v5e:2x2
jax: 0.10.0
libtpu: 0.0.40
codegen_flags: <defaults>
</compile_context>

<pallas_src>
import math

import jax
import jax.numpy as jnp
from jax.experimental import pallas as pl
from jax.experimental.pallas import tpu as pltpu

# Fixed parameters exactly as in FCTestModel.__init__ (PyTorch layout: (out, in)).
_WEIGHT = (
    (0.1, 0.2, 0.3, 0.2),
    (0.3, -0.1, 0.2, 0.4),
)                      # (N=2, K=4)
_BIAS = (1.0, 1.1)     # (N=2,)
_N_OUT = len(_BIAS)    # 2
_K_IN = len(_WEIGHT[0])  # 4

# Lane-axis tile (multiple of 128). Per grid step: x (4,512)f32 + y (2,512)f32,
# double-buffered -> ~24 KiB VMEM.  Safe on v5e/v6e/v7x.
_TILE_M = 512


def _fc_kernel(xt_ref, yt_ref):
    """y^T = W @ x^T + b, with rows (M) on the lane axis.

    xt_ref: (K=4, TILE_M) f32 in VMEM; yt_ref: (N=2, TILE_M) f32 in VMEM.
    Each output row j is b[j] + sum_k W[j][k] * x^T[k, :] -- scalar-constant *
    lane-vector FMA chains on the VPU, lane-dense reads and stores.
    """
    xt = xt_ref[...]                                   # (K, TILE_M)
    rows = []
    for j in range(_N_OUT):
        w = _WEIGHT[j]
        acc = _BIAS[j] + w[0] * xt[0:1, :]             # (1, TILE_M)
        for k in range(1, _K_IN):
            acc = acc + w[k] * xt[k : k + 1, :]        # VPU FMA, all lanes used
        rows.append(acc)
    yt_ref[...] = jnp.concatenate(rows, axis=0)        # one (N, TILE_M) store


@jax.jit
def fc_forward(x):
    """x: (..., 4) -> (..., 2); matches FCTestModel.forward (Linear on last dim)."""
    lead_shape = x.shape[:-1]
    k = x.shape[-1]
    assert k == _K_IN, f"expected last dim {_K_IN}, got {k}"
    m = math.prod(lead_shape)

    if m == 0:  # empty leading dims: nothing to compute
        return jnp.zeros((*lead_shape, _N_OUT), dtype=jnp.float32)

    # Lane-dense layout: put rows on the 128-lane axis -> (K, M).
    xt = x.reshape(m, k).astype(jnp.float32).T         # (K, M)

    m_pad = pl.cdiv(m, _TILE_M) * _TILE_M
    if m_pad != m:
        xt = jnp.pad(xt, ((0, 0), (0, m_pad - m)))     # zero-pad lanes

    yt = pl.pallas_call(
        _fc_kernel,
        out_shape=jax.ShapeDtypeStruct((_N_OUT, m_pad), jnp.float32),
        grid=(m_pad // _TILE_M,),
        in_specs=[pl.BlockSpec((_K_IN, _TILE_M), lambda i: (0, i))],
        out_specs=pl.BlockSpec((_N_OUT, _TILE_M), lambda i: (0, i)),
        compiler_params=pltpu.CompilerParams(
            dimension_semantics=("parallel",),          # shard grid over TCs (v7x)
        ),
    )(xt)                                               # (N, m_pad)

    y = yt[:, :m].T                                     # (M, N)
    return y.reshape(*lead_shape, _N_OUT)


if __name__ == "__main__":
    weight = jnp.asarray(_WEIGHT, dtype=jnp.float32)
    bias = jnp.asarray(_BIAS, dtype=jnp.float32)

    # Deterministic input at the module's INPUT_SIZE = [1, 1, 4, 4].
    key = jax.random.PRNGKey(0)
    x = jax.random.normal(key, (1, 1, 4, 4), dtype=jnp.float32)
    y = fc_forward(x)
    jax.block_until_ready(y)

    y_ref = jnp.einsum("...w,ow->...o", x, weight) + bias
    assert y.shape == (1, 1, 4, 2), y.shape
    assert jnp.allclose(y, y_ref, atol=1e-6, rtol=1e-6), float(jnp.max(jnp.abs(y - y_ref)))

    # Larger deterministic batch to exercise the gridded (multi-tile) path:
    # M = 2*4*160 = 1280 rows -> 3 tiles of 512 lanes.
    x_big = jax.random.normal(jax.random.PRNGKey(1), (2, 4, 160, 4), dtype=jnp.float32)
    y_big = fc_forward(x_big)
    jax.block_until_ready(y_big)
    y_big_ref = jnp.einsum("...w,ow->...o", x_big, weight) + bias
    assert y_big.shape == (2, 4, 160, 2), y_big.shape
    assert jnp.allclose(y_big, y_big_ref, atol=1e-5, rtol=1e-5), float(
        jnp.max(jnp.abs(y_big - y_big_ref))
    )

    print("KERNEL_OK")
</pallas_src>

<mosaic_0001>
module attributes {stable_mosaic.version = 11 : i64} {
  func.func @_fc_kernel(%arg0: i32, %arg1: memref<4x512xf32, #tpu.memory_space<vmem>>, %arg2: memref<2x512xf32, #tpu.memory_space<vmem>>) attributes {dimension_semantics = [#tpu.dimension_semantics<parallel>], iteration_bounds = array<i64: 1>, scalar_prefetch = 0 : i64, scratch_operands = 0 : i64, tpu.core_type = #tpu.core_type<tc>, window_params = [{transform_indices = @transform_0, window_bounds = array<i64: 4, 512>}, {transform_indices = @transform_1, window_bounds = array<i64: 2, 512>}]} {
    %c0 = arith.constant 0 : index
    %c0_0 = arith.constant 0 : index
    %0 = vector.load %arg1[%c0, %c0_0] : memref<4x512xf32, #tpu.memory_space<vmem>>, vector<4x512xf32>
    %1 = vector.extract_strided_slice %0 {offsets = [0, 0], sizes = [1, 512], strides = [1, 1]} : vector<4x512xf32> to vector<1x512xf32>
    %cst = arith.constant 1.000000e-01 : f32
    %2 = vector.broadcast %cst : f32 to vector<1x512xf32>
    %3 = arith.mulf %2, %1 : vector<1x512xf32>
    %cst_1 = arith.constant 1.000000e+00 : f32
    %4 = vector.broadcast %cst_1 : f32 to vector<1x512xf32>
    %5 = arith.addf %4, %3 : vector<1x512xf32>
    %6 = vector.extract_strided_slice %0 {offsets = [1, 0], sizes = [1, 512], strides = [1, 1]} : vector<4x512xf32> to vector<1x512xf32>
    %cst_2 = arith.constant 2.000000e-01 : f32
    %7 = vector.broadcast %cst_2 : f32 to vector<1x512xf32>
    %8 = arith.mulf %7, %6 : vector<1x512xf32>
    %9 = arith.addf %5, %8 : vector<1x512xf32>
    %10 = vector.extract_strided_slice %0 {offsets = [2, 0], sizes = [1, 512], strides = [1, 1]} : vector<4x512xf32> to vector<1x512xf32>
    %cst_3 = arith.constant 3.000000e-01 : f32
    %11 = vector.broadcast %cst_3 : f32 to vector<1x512xf32>
    %12 = arith.mulf %11, %10 : vector<1x512xf32>
    %13 = arith.addf %9, %12 : vector<1x512xf32>
    %14 = vector.extract_strided_slice %0 {offsets = [3, 0], sizes = [1, 512], strides = [1, 1]} : vector<4x512xf32> to vector<1x512xf32>
    %cst_4 = arith.constant 2.000000e-01 : f32
    %15 = vector.broadcast %cst_4 : f32 to vector<1x512xf32>
    %16 = arith.mulf %15, %14 : vector<1x512xf32>
    %17 = arith.addf %13, %16 : vector<1x512xf32>
    %18 = vector.extract_strided_slice %0 {offsets = [0, 0], sizes = [1, 512], strides = [1, 1]} : vector<4x512xf32> to vector<1x512xf32>
    %cst_5 = arith.constant 3.000000e-01 : f32
    %19 = vector.broadcast %cst_5 : f32 to vector<1x512xf32>
    %20 = arith.mulf %19, %18 : vector<1x512xf32>
    %cst_6 = arith.constant 1.100000e+00 : f32
    %21 = vector.broadcast %cst_6 : f32 to vector<1x512xf32>
    %22 = arith.addf %21, %20 : vector<1x512xf32>
    %23 = vector.extract_strided_slice %0 {offsets = [1, 0], sizes = [1, 512], strides = [1, 1]} : vector<4x512xf32> to vector<1x512xf32>
    %cst_7 = arith.constant -1.000000e-01 : f32
    %24 = vector.broadcast %cst_7 : f32 to vector<1x512xf32>
    %25 = arith.mulf %24, %23 : vector<1x512xf32>
    %26 = arith.addf %22, %25 : vector<1x512xf32>
    %27 = vector.extract_strided_slice %0 {offsets = [2, 0], sizes = [1, 512], strides = [1, 1]} : vector<4x512xf32> to vector<1x512xf32>
    %cst_8 = arith.constant 2.000000e-01 : f32
    %28 = vector.broadcast %cst_8 : f32 to vector<1x512xf32>
    %29 = arith.mulf %28, %27 : vector<1x512xf32>
    %30 = arith.addf %26, %29 : vector<1x512xf32>
    %31 = vector.extract_strided_slice %0 {offsets = [3, 0], sizes = [1, 512], strides = [1, 1]} : vector<4x512xf32> to vector<1x512xf32>
    %cst_9 = arith.constant 4.000000e-01 : f32
    %32 = vector.broadcast %cst_9 : f32 to vector<1x512xf32>
    %33 = arith.mulf %32, %31 : vector<1x512xf32>
    %34 = arith.addf %30, %33 : vector<1x512xf32>
    %35 = tpu.concatenate %17, %34 in 0 : vector<1x512xf32>, vector<1x512xf32> -> vector<2x512xf32>
    %c0_10 = arith.constant 0 : index
    %c0_11 = arith.constant 0 : index
    %36 = vector.load %arg2[%c0_10, %c0_11] : memref<2x512xf32, #tpu.memory_space<vmem>>, vector<2x512xf32>
    tpu.vector_store %arg2[%c0_10, %c0_11], %35 {strides = array<i32>} : memref<2x512xf32, #tpu.memory_space<vmem>>, vector<2x512xf32>,
    return
  }
  func.func @transform_0(%arg0: i32) -> (i32, i32) {
    %c0_i32 = arith.constant 0 : i32
    %c0_i32_0 = arith.constant 0 : i32
    return %c0_i32, %arg0 : i32, i32
  }
  func.func @transform_1(%arg0: i32) -> (i32, i32) {
    %c0_i32 = arith.constant 0 : i32
    %c0_i32_0 = arith.constant 0 : i32
    return %c0_i32, %arg0 : i32, i32
  }
}

</mosaic_0001>

<llo_original>
// kernel: fc_forward.1
$region0: #{fc_forward.1}
  #allocation0 [shape = 'u32[]', space=smem, size = 0x4, offset = 0x4, fixed_abs, tag = 'smem constant byte address 0x4 - core index']
  #allocation1 [shape = 'u32[72,128]{1,0:T(1,128)}', space=vmem, size = 0x9000, scoped, tag = 'internal scratch']
  %s0 = inlined_call_operand.vmem [shape: f32[4,512], index: 0, kind: input, shape index: {}]
  %s1 = inlined_call_operand.vmem [shape: f32[2,512], index: 1, kind: output, shape index: {}]
  %s2 = sld [smem:[#allocation0]]
  $region14: #{fc_forward.1} parent=0
    _
  %s4 = ssub.s32 1, %s2
  %s5 = scalar_select 0, %s4, %s2
  // Predicated region
  $region2: #{fc_forward.1} parent=0 // pred_check
    _
  $region3: #{fc_forward.1} parent=0 // pred_check_branch
    %7 = sbr.rel (0) target = $region5
  $region4: #{fc_forward.1} parent=0 // pred_region
    _
  $region5: #{fc_forward.1} parent=0 // pred_fallthru
    _
  %v8 = vld [vmem:[%s0] sm:$0xff]
  %v9 = vld [vmem:[%s0 + $0x8] sm:$0xff]
  %v10 = vmul.f32 %v8, 0.1
  %v11 = vmul.f32 %v9, 0.1
  %v12 = vadd.f32 %v10, 1.0
  %v13 = vadd.f32 %v11, 1.0
  %v14 = vmul.f32 %v8, 0.2
  %v15 = vmul.f32 %v9, 0.2
  %v18 = vrot.slane %v14, 5
  %v19 = vrot.slane %v18, 4
  %v20 = vrot.slane %v15, 5
  %v21 = vrot.slane %v20, 4
  %v24 = vadd.f32 %v12, %v19
  %v25 = vadd.f32 %v13, %v21
  %v26 = vmul.f32 %v8, 0.3
  %v27 = vmul.f32 %v9, 0.3
  %v30 = vrot.slane %v26, 6
  %v31 = vrot.slane %v30, 4
  %v32 = vrot.slane %v27, 6
  %v33 = vrot.slane %v32, 4
  %v36 = vadd.f32 %v24, %v31
  %v37 = vadd.f32 %v25, %v33
  %v38 = vrot.slane %v14, 7
  %v39 = vrot.slane %v38, 4
  %v40 = vrot.slane %v15, 7
  %v41 = vrot.slane %v40, 4
  %v44 = vadd.f32 %v36, %v39
  %v45 = vadd.f32 %v37, %v41
  %v46 = vadd.f32 %v26, 1.1
  %v47 = vadd.f32 %v27, 1.1
  %v48 = vmul.f32 %v8, -0.1
  %v49 = vmul.f32 %v9, -0.1
  %v52 = vrot.slane %v48, 5
  %v53 = vrot.slane %v52, 4
  %v54 = vrot.slane %v49, 5
  %v55 = vrot.slane %v54, 4
  %v58 = vadd.f32 %v46, %v53
  %v59 = vadd.f32 %v47, %v55
  %v60 = vrot.slane %v14, 6
  %v61 = vrot.slane %v60, 4
  %v62 = vrot.slane %v15, 6
  %v63 = vrot.slane %v62, 4
  %v66 = vadd.f32 %v58, %v61
  %v67 = vadd.f32 %v59, %v63
  %v68 = vmul.f32 %v8, 0.4
  %v69 = vmul.f32 %v9, 0.4
  %v72 = vrot.slane %v68, 7
  %v73 = vrot.slane %v72, 4
  %v74 = vrot.slane %v69, 7
  %v75 = vrot.slane %v74, 4
  %v78 = vadd.f32 %v66, %v73
  %v79 = vadd.f32 %v67, %v75
  %v82 = vperm.slane %v44, 0
  %v83 = vperm.slane %v44, 4
  %v84 = vperm.slane %v45, 0
  %v85 = vperm.slane %v45, 4
  %v92 = vperm.slane %v78, 0
  %v93 = vperm.slane %v78, 4
  %v94 = vperm.slane %v79, 0
  %v95 = vperm.slane %v79, 4
  %vm100 = vcmask 1040384
  %v101 = vsel %vm100, %v82, %v92
  %v102 = vsel %vm100, %v83, %v93
  %v103 = vsel %vm100, %v84, %v94
  %v104 = vsel %vm100, %v85, %v95
  %v109 = vrot.slane %v102, 6
  %v110 = vrot.slane %v103, 4
  %v111 = vrot.slane %v104, 2
  %vm112 = vcmask 1041408
  %v113 = vsel %vm112, %v101, %v109
  %vm114 = vcmask 1045508
  %v115 = vsel %vm114, %v110, %v111
  %vm116 = vcmask 1043456
  %v117 = vsel %vm116, %v113, %v115
  %119 = vst [vmem:[%s1] sm:$0xff] %v117
  // Predicated region
  $region6: #{fc_forward.1} parent=0 // pred_check
    _
  $region7: #{fc_forward.1} parent=0 // pred_check_branch
    %121 = sbr.rel (0) target = $region9
  $region8: #{fc_forward.1} parent=0 // pred_region
    _
  $region9: #{fc_forward.1} parent=0 // pred_fallthru
    _
  // Predicated region
  $region10: #{fc_forward.1} parent=0 // pred_check
    _
  $region11: #{fc_forward.1} parent=0 // pred_check_branch
    %123 = sbr.rel (0) target = $region13
  $region12: #{fc_forward.1} parent=0 // pred_region
    _
  $region13: #{fc_forward.1} parent=0 // pred_fallthru
    _

</llo_original>
